<compile_context>
chip_gen: v7x
topology: tpu7x:2x2x1
jax: 0.10.0
libtpu: 0.0.40
codegen_flags: <defaults>
</compile_context>

<pallas_src>
import jax
import jax.numpy as jnp
from jax.experimental import pallas as pl
from jax.experimental.pallas import tpu as pltpu
from dataclasses import dataclass


# ----------------------------- kernel ----------------------------------------

def _mlp_kernel(x_ref, w1_ref, b1_ref, w2_ref, b2_ref, out_ref):
    """logits = Linear2(dropout(relu(Linear1(x))))  (inference).

    Weight-norm scales (and, for the default branch, the projection Linear)
    are pre-folded into w1/w2 (bf16); all matmuls accumulate in f32.
    """
    x = x_ref[...].astype(jnp.bfloat16)          # no-op when x is already bf16
    h = jnp.dot(x, w1_ref[...], preferred_element_type=jnp.float32) + b1_ref[...]
    h = jnp.maximum(h, 0.0)                      # ReLU
    # TODO(synk): nn.Dropout is identity in eval mode; training-mode dropout
    # (mask + 1/(1-p) scaling) is not implemented.
    out_ref[...] = (jnp.dot(h.astype(jnp.bfloat16), w2_ref[...],
                            preferred_element_type=jnp.float32)
                    + b2_ref[...]).astype(out_ref.dtype)


# ----------------------------- wrapper ---------------------------------------

_MAX_BATCH_TILE = 512  # rows per grid step once the batch is large


def _round_up(x, m):
    return ((x + m - 1) // m) * m


def _tensorcores_per_chip():
    """2 TensorCores per chip on v7x; 1 on v5e/v6e."""
    try:
        kind = jax.devices()[0].device_kind.lower()
    except Exception:
        return 1
    return 2 if "v7" in kind else 1


def _batch_tile(batch, n_cores):
    # Small batches: one full block (full-extent dims are exempt from the
    # (8,128) divisibility rule).
    if n_cores > 1 and batch > 128:
        # Multi-TC chip: ensure grid >= 2 so both cores get work; keep the
        # tile sublane-aligned (multiple of 8) and capped.
        return min(_MAX_BATCH_TILE, _round_up(pl.cdiv(batch, n_cores), 8))
    return batch if batch <= _MAX_BATCH_TILE else _MAX_BATCH_TILE


def _call(kernel, x, weights, out_dim):
    batch, in_feat = x.shape
    n_cores = _tensorcores_per_chip()
    tb = _batch_tile(batch, n_cores)
    grid_len = pl.cdiv(batch, tb)

    if n_cores > 1 and grid_len >= 2:
        # Only core_parallel actually changes codegen; shard batch tiles
        # across v7x's two TensorCores.
        semantics = (pltpu.CORE_PARALLEL,)
    else:
        semantics = ("parallel",)

    # Weight/bias blocks are grid-invariant (index_map always (0,0)): Pallas
    # only re-DMAs a block when its index changes, and post-fold they total
    # ~0.2 MiB, so the default double buffering is harmless.
    in_specs = ([pl.BlockSpec((tb, in_feat), lambda i: (i, 0))]
                + [pl.BlockSpec(w.shape, lambda i: (0, 0)) for w in weights])

    return pl.pallas_call(
        kernel,
        out_shape=jax.ShapeDtypeStruct((batch, out_dim), jnp.float32),
        grid=(grid_len,),
        in_specs=in_specs,
        out_specs=pl.BlockSpec((tb, out_dim), lambda i: (i, 0)),
        compiler_params=pltpu.CompilerParams(dimension_semantics=semantics),
    )(x, *weights)


# ----------------------------- module plumbing --------------------------------

@dataclass
class Args:
    activation: str = "relu"
    dropout: float = 0.5
    test_visual: bool = False
    test_text: bool = False
    test_all: bool = False
    test_A: bool = False
    test_B: bool = False
    test_C: bool = False


def _any_test(args: Args):
    return (args.test_visual or args.test_text or args.test_all
            or args.test_A or args.test_B or args.test_C)


def init_params(key, in_dim, hid_dim, out_dim):
    """Deterministic PyTorch-Linear-style init (U(-1/sqrt(fan_in), +)).

    Returns raw (PyTorch-layout, f32) parameters: v/g/b for the two
    weight-normed Linears and w/b for the projection Linear(768, 1024).
    """
    ks = jax.random.split(key, 6)

    def lin(kw, kb, fan_in, fan_out):
        bound = 1.0 / jnp.sqrt(fan_in)
        w = jax.random.uniform(kw, (fan_out, fan_in), jnp.float32, -bound, bound)
        b = jax.random.uniform(kb, (fan_out,), jnp.float32, -bound, bound)
        return w, b

    v1, b1 = lin(ks[0], ks[1], in_dim, hid_dim)        # weight_norm Linear 1
    v2, b2 = lin(ks[2], ks[3], hid_dim, out_dim)       # weight_norm Linear 2
    pw, pb = lin(ks[4], ks[5], 768, 1024)              # projection Linear
    g1 = jnp.linalg.norm(v1).reshape(1, 1)             # dim=None -> scalar g = ||V||_F
    g2 = jnp.linalg.norm(v2).reshape(1, 1)
    return dict(v1=v1, g1=g1, b1=b1, v2=v2, g2=g2, b2=b2, pw=pw, pb=pb)


def prepare_params(raw):
    """One-time conversion into kernel-ready layout (do NOT redo per call):

      - weight-norm scale g/||V||_F folded into V (f32 math), transposed to
        [in, out], cast bf16,
      - projection folded into Linear 1 for the default branch:
        w1p = pw^T @ w1^T (f32 product, then one bf16 cast), b1p = pb @ w1^T + b1,
      - biases kept f32 as [1, out] rows.
    """
    def wn(v, g):  # weight_norm(dim=None): W = (g / ||V||_F) * V
        return (g / jnp.linalg.norm(v)) * v

    w1 = wn(raw["v1"], raw["g1"][0, 0]).T              # [in, hid]  f32
    w2 = wn(raw["v2"], raw["g2"][0, 0]).T              # [hid, out] f32
    pw_t = raw["pw"].T                                  # [768, 1024] f32
    b1 = raw["b1"].reshape(1, -1)
    b2 = raw["b2"].reshape(1, -1)
    pb = raw["pb"].reshape(1, -1)

    w1p = pw_t @ w1                                     # [768, hid] f32 fold
    b1p = pb @ w1 + b1                                  # [1, hid]   f32 fold

    return dict(
        # test_* branch (x already [batch, in_dim])
        w1_t=w1.astype(jnp.bfloat16), b1=b1.astype(jnp.float32),
        # default branch (projection folded in; x is [batch, 768])
        w1p=w1p.astype(jnp.bfloat16), b1p=b1p.astype(jnp.float32),
        # shared second layer
        w2_t=w2.astype(jnp.bfloat16), b2=b2.astype(jnp.float32),
    )


def simple_classifier_forward(prepared, args: Args, x):
    out_dim = prepared["w2_t"].shape[1]
    if _any_test(args):
        weights = (prepared["w1_t"], prepared["b1"],
                   prepared["w2_t"], prepared["b2"])
    else:
        weights = (prepared["w1p"], prepared["b1p"],
                   prepared["w2_t"], prepared["b2"])
    return _call(_mlp_kernel, x, weights, out_dim)


# ----------------------------- references ------------------------------------

def _reference_prepared(prepared, args: Args, x):
    """Same math / dtypes as the kernel (bf16 operands, f32 accumulate)."""
    def lin(x, w_bf16, b):
        return jnp.dot(x.astype(jnp.bfloat16), w_bf16,
                       preferred_element_type=jnp.float32) + b
    if _any_test(args):
        w1, b1 = prepared["w1_t"], prepared["b1"]
    else:
        w1, b1 = prepared["w1p"], prepared["b1p"]
    h = jnp.maximum(lin(x, w1, b1), 0.0)
    return lin(h, prepared["w2_t"], prepared["b2"])


def _reference_f32(raw, args: Args, x):
    """Full-precision weight_norm(dim=None) semantics, as in the PyTorch module."""
    def wn_lin(x, v, g, b):
        w = (g[0, 0] / jnp.linalg.norm(v)) * v
        return x @ w.T + b
    if not _any_test(args):
        x = x @ raw["pw"].T + raw["pb"]
    h = jnp.maximum(wn_lin(x, raw["v1"], raw["g1"], raw["b1"]), 0.0)
    return wn_lin(h, raw["v2"], raw["g2"], raw["b2"])


# ----------------------------- demo / check ----------------------------------

if __name__ == "__main__":
    key = jax.random.PRNGKey(0)
    k_param, k_x1, k_x2 = jax.random.split(key, 3)

    # default branch forces in_dim = 1024 (projection output); keep others small
    in_dim, hid_dim, out_dim, batch = 1024, 128, 32, 2
    raw = init_params(k_param, in_dim, hid_dim, out_dim)
    prepared = prepare_params(raw)          # one-time: fold + transpose + bf16

    # 1) default branch: x is [batch, 768]; projection folded into layer 1
    args_default = Args()
    x_default = jax.random.normal(k_x1, (batch, 768), jnp.float32)
    out_default = simple_classifier_forward(prepared, args_default, x_default)
    jax.block_until_ready(out_default)
    assert jnp.allclose(out_default,
                        _reference_prepared(prepared, args_default, x_default),
                        atol=2e-3, rtol=2e-3)
    assert jnp.allclose(out_default,
                        _reference_f32(raw, args_default, x_default),
                        atol=2e-2, rtol=2e-2)

    # 1b) bf16 activations accepted directly (no wrapper cast / extra HBM trip)
    x_bf16 = x_default.astype(jnp.bfloat16)
    out_bf16 = simple_classifier_forward(prepared, args_default, x_bf16)
    jax.block_until_ready(out_bf16)
    assert jnp.allclose(out_bf16,
                        _reference_prepared(prepared, args_default, x_bf16),
                        atol=2e-3, rtol=2e-3)

    # 2) test branch (e.g. test_visual): x is [batch, in_dim] -> main only
    args_test = Args(test_visual=True)
    x_test = jax.random.normal(k_x2, (batch, in_dim), jnp.float32)
    out_test = simple_classifier_forward(prepared, args_test, x_test)
    jax.block_until_ready(out_test)
    assert jnp.allclose(out_test,
                        _reference_prepared(prepared, args_test, x_test),
                        atol=2e-3, rtol=2e-3)
    assert jnp.allclose(out_test,
                        _reference_f32(raw, args_test, x_test),
                        atol=2e-2, rtol=2e-2)

    print("KERNEL_OK")
</pallas_src>

<mosaic_0001>
module attributes {stable_mosaic.version = 11 : i64} {
  func.func @_mlp_kernel(%arg0: i32, %arg1: memref<2x768xf32, #tpu.memory_space<vmem>>, %arg2: memref<768x128xbf16, #tpu.memory_space<vmem>>, %arg3: memref<1x128xf32, #tpu.memory_space<vmem>>, %arg4: memref<128x32xbf16, #tpu.memory_space<vmem>>, %arg5: memref<1x32xf32, #tpu.memory_space<vmem>>, %arg6: memref<2x32xf32, #tpu.memory_space<vmem>>) attributes {dimension_semantics = [#tpu.dimension_semantics<parallel>], iteration_bounds = array<i64: 1>, scalar_prefetch = 0 : i64, scratch_operands = 0 : i64, tpu.core_type = #tpu.core_type<tc>, window_params = [{transform_indices = @transform_0, window_bounds = array<i64: 2, 768>}, {pipeline_mode = #tpu.pipeline_mode<synchronous>, transform_indices = @transform_1, window_bounds = array<i64: 768, 128>}, {pipeline_mode = #tpu.pipeline_mode<synchronous>, transform_indices = @transform_2, window_bounds = array<i64: 1, 128>}, {pipeline_mode = #tpu.pipeline_mode<synchronous>, transform_indices = @transform_3, window_bounds = array<i64: 128, 32>}, {pipeline_mode = #tpu.pipeline_mode<synchronous>, transform_indices = @transform_4, window_bounds = array<i64: 1, 32>}, {transform_indices = @transform_5, window_bounds = array<i64: 2, 32>}]} {
    %c0 = arith.constant 0 : index
    %c0_0 = arith.constant 0 : index
    %0 = vector.load %arg1[%c0, %c0_0] : memref<2x768xf32, #tpu.memory_space<vmem>>, vector<2x768xf32>
    %1 = arith.truncf %0 : vector<2x768xf32> to vector<2x768xbf16>
    %c0_1 = arith.constant 0 : index
    %c0_2 = arith.constant 0 : index
    %2 = vector.load %arg2[%c0_1, %c0_2] : memref<768x128xbf16, #tpu.memory_space<vmem>>, vector<768x128xbf16>
    %cst = arith.constant dense<0.000000e+00> : vector<2x128xf32>
    %3 = tpu.matmul %1, %2, %cst {dimension_numbers = #tpu.dot_dimension_numbers<[1], [0], [0], [1], [0, 0, 1, 1], [], []>} : vector<2x768xbf16>, vector<768x128xbf16>, vector<2x128xf32> -> vector<2x128xf32>
    %c0_3 = arith.constant 0 : index
    %c0_4 = arith.constant 0 : index
    %4 = vector.load %arg3[%c0_3, %c0_4] : memref<1x128xf32, #tpu.memory_space<vmem>>, vector<1x128xf32>
    %5 = vector.broadcast %4 : vector<1x128xf32> to vector<2x128xf32>
    %6 = arith.addf %3, %5 : vector<2x128xf32>
    %cst_5 = arith.constant 0.000000e+00 : f32
    %7 = vector.broadcast %cst_5 : f32 to vector<2x128xf32>
    %8 = arith.maximumf %6, %7 : vector<2x128xf32>
    %9 = arith.truncf %8 : vector<2x128xf32> to vector<2x128xbf16>
    %c0_6 = arith.constant 0 : index
    %c0_7 = arith.constant 0 : index
    %10 = vector.load %arg4[%c0_6, %c0_7] : memref<128x32xbf16, #tpu.memory_space<vmem>>, vector<128x32xbf16>
    %cst_8 = arith.constant dense<0.000000e+00> : vector<2x32xf32>
    %11 = tpu.matmul %9, %10, %cst_8 {dimension_numbers = #tpu.dot_dimension_numbers<[1], [0], [0], [1], [0, 0, 1, 1], [], []>} : vector<2x128xbf16>, vector<128x32xbf16>, vector<2x32xf32> -> vector<2x32xf32>
    %c0_9 = arith.constant 0 : index
    %c0_10 = arith.constant 0 : index
    %12 = vector.load %arg5[%c0_9, %c0_10] : memref<1x32xf32, #tpu.memory_space<vmem>>, vector<1x32xf32>
    %13 = vector.broadcast %12 : vector<1x32xf32> to vector<2x32xf32>
    %14 = arith.addf %11, %13 : vector<2x32xf32>
    %c0_11 = arith.constant 0 : index
    %c0_12 = arith.constant 0 : index
    %15 = vector.load %arg6[%c0_11, %c0_12] : memref<2x32xf32, #tpu.memory_space<vmem>>, vector<2x32xf32>
    tpu.vector_store %arg6[%c0_11, %c0_12], %14 {strides = array<i32>} : memref<2x32xf32, #tpu.memory_space<vmem>>, vector<2x32xf32>,
    return
  }
  func.func @transform_0(%arg0: i32) -> (i32, i32) {
    %c0_i32 = arith.constant 0 : i32
    %c0_i32_0 = arith.constant 0 : i32
    return %arg0, %c0_i32 : i32, i32
  }
  func.func @transform_1(%arg0: i32) -> (i32, i32) {
    %c0_i32 = arith.constant 0 : i32
    %c0_i32_0 = arith.constant 0 : i32
    %c0_i32_1 = arith.constant 0 : i32
    return %c0_i32, %c0_i32_0 : i32, i32
  }
  func.func @transform_2(%arg0: i32) -> (i32, i32) {
    %c0_i32 = arith.constant 0 : i32
    %c0_i32_0 = arith.constant 0 : i32
    %c0_i32_1 = arith.constant 0 : i32
    return %c0_i32, %c0_i32_0 : i32, i32
  }
  func.func @transform_3(%arg0: i32) -> (i32, i32) {
    %c0_i32 = arith.constant 0 : i32
    %c0_i32_0 = arith.constant 0 : i32
    %c0_i32_1 = arith.constant 0 : i32
    return %c0_i32, %c0_i32_0 : i32, i32
  }
  func.func @transform_4(%arg0: i32) -> (i32, i32) {
    %c0_i32 = arith.constant 0 : i32
    %c0_i32_0 = arith.constant 0 : i32
    %c0_i32_1 = arith.constant 0 : i32
    return %c0_i32, %c0_i32_0 : i32, i32
  }
  func.func @transform_5(%arg0: i32) -> (i32, i32) {
    %c0_i32 = arith.constant 0 : i32
    %c0_i32_0 = arith.constant 0 : i32
    return %arg0, %c0_i32 : i32, i32
  }
}

</mosaic_0001>

<llo_original>
// kernel: tpu_custom_call.1
$region0: #{tpu_custom_call.1}
  #allocation0 [shape = 'u32[]', space=smem, size = 0x4, offset = 0x4, fixed_abs, tag = 'smem constant byte address 0x4 - core index']
  #allocation1 [shape = 'u32[144,128]{1,0:T(1,128)}', space=vmem, size = 0x12000, scoped, tag = 'internal scratch']
  %s0 = inlined_call_operand.vmem [shape: f32[2,768], index: 0, kind: input, shape index: {}]
  %s1 = inlined_call_operand.hbm [shape: bf16[768,128], index: 1, kind: input, shape index: {}]
  %s2 = inlined_call_operand.vmem [shape: f32[1,128], index: 2, kind: input, shape index: {}]
  %s3 = inlined_call_operand.vmem [shape: bf16[128,32], index: 3, kind: input, shape index: {}]
  %s4 = inlined_call_operand.vmem [shape: f32[1,32], index: 4, kind: input, shape index: {}]
  %s5 = inlined_call_operand.hbm [shape: f32[2,32], index: 5, kind: output, shape index: {}]
  %s6 = sld [smem:[#allocation0]]
  $region34: #{tpu_custom_call.1} parent=0
    _
  %s8 = ssub.s32 1, %s6
  %s9 = scalar_select 0, %s8, %s6
  $region1: #{tpu_custom_call.1} parent=0
    #allocation2 [shape = 'u8[196608]{0}', space=vmem, size = 0x30000, scoped, tag = 'input window, operand 1, single buffered']
    #allocation3 [shape = 's32[1]{0}', space=sflag, size = 0x4, scoped, tag = 'scoped memory for tpu_custom_call.1']
    #allocation4 [shape = 's32[1]{0}', space=sflag, size = 0x4, scoped, tag = 'scoped memory for tpu_custom_call.1']
    #allocation5 [shape = 'u8[1024]{0}', space=vmem, size = 0x400, scoped, tag = 'output window, operand 0, single buffered']
    %10 = vsyncpa [#allocation3], 0
    %11 = vsyncpa [#allocation4], 0
    // Predicated region
    $region2: #{tpu_custom_call.1} parent=1 // pred_check
      _
    $region3: #{tpu_custom_call.1} parent=1 // pred_check_branch
      %13 = sbr.rel (0) target = $region5
    $region4: #{tpu_custom_call.1} parent=1 // pred_region
      _
    $region5: #{tpu_custom_call.1} parent=1 // pred_fallthru
      _
    // Predicated region
    $region6: #{tpu_custom_call.1} parent=1 // pred_check
      _
    $region7: #{tpu_custom_call.1} parent=1 // pred_check_branch
      %15 = sbr.rel (0) target = $region9
    $region8: #{tpu_custom_call.1} parent=1 // pred_region
      %s17 = ssub.s32 6144, 6144
      %18 = vsyncadd [#allocation3], %s17
      %s19 = sshll.u32 [#allocation2], 4
      %s20 = int_to_ptr.vmem [resolvable:$true] %s19
      %25 = dma.hbm_to_vmem [thread:$0]  %s1, 6144, %s20, [#allocation3], 64, 64, 4
    $region9: #{tpu_custom_call.1} parent=1 // pred_fallthru
      _
    // Predicated region
    $region10: #{tpu_custom_call.1} parent=1 // pred_check
      _
    $region11: #{tpu_custom_call.1} parent=1 // pred_check_branch
      %27 = sbr.rel (0) target = $region13
    $region12: #{tpu_custom_call.1} parent=1 // pred_region
      _
    $region13: #{tpu_custom_call.1} parent=1 // pred_fallthru
      _
    // Predicated region
    $region14: #{tpu_custom_call.1} parent=1 // pred_check
      _
    $region15: #{tpu_custom_call.1} parent=1 // pred_check_branch
      %29 = sbr.rel (0) target = $region17
    $region16: #{tpu_custom_call.1} parent=1 // pred_region
      _
    $region17: #{tpu_custom_call.1} parent=1 // pred_fallthru
      _
    // Predicated region
    $region18: #{tpu_custom_call.1} parent=1 // pred_check
      _
    $region19: #{tpu_custom_call.1} parent=1 // pred_check_branch
      %31 = sbr.rel (0) target = $region21
    $region20: #{tpu_custom_call.1} parent=1 // pred_region
      _
    $region21: #{tpu_custom_call.1} parent=1 // pred_fallthru
      _
    // Predicated region
    $region22: #{tpu_custom_call.1} parent=1 // pred_check
      _
    $region23: #{tpu_custom_call.1} parent=1 // pred_check_branch
      %33 = sbr.rel (0) target = $region25
    $region24: #{tpu_custom_call.1} parent=1 // pred_region
      %34 = dma.done [#allocation3], 6144
    $region25: #{tpu_custom_call.1} parent=1 // pred_fallthru
      _
    %v36 = vld [vmem:[%s0] sm:$0xff]
    %v37 = vld [vmem:[%s0 + $0x8] sm:$0xf]
    %v40 = vcombine.high %v36, %v36
    %v42 = vunpack.c.l.s4 1983009808
    %v43 = vunpack.c.0.s8 %v42
    %v44 = vlaneseq
    %v45 = vshrl.u32 %v44, 7
    %v46 = vsub.s32 %v43, %v45
    %v47 = vrot.slane %v36, %v46
    %v49 = vunpack.c.l.s4 1983009808
    %v50 = vunpack.c.0.s8 %v49
    %v51 = vlaneseq
    %v52 = vshrl.u32 %v51, 7
    %v53 = vsub.s32 %v50, %v52
    %v54 = vrot.slane %v40, %v53
    %v55 = vcombine.high %v47, %v47
    %v56 = vcombine.high %v54, %v54
    %v58 = vunpack.c.l.s4 1983009808
    %v59 = vunpack.c.0.s8 %v58
    %v60 = vlaneseq
    %v61 = vshrl.u32 %v60, 7
    %v62 = vsub.s32 %v59, %v61
    %v63 = vrot.slane %v37, %v62
    %v64 = vcombine.high %v63, %v63
    %v71 = vpack.c.bf16 %v47, %v47
    %v72 = vpack.c.bf16 %v55, %v55
    %v73 = vpack.c.bf16 %v54, %v54
    %v74 = vpack.c.bf16 %v56, %v56
    %v75 = vpack.c.bf16 %v63, %v63
    %v76 = vpack.c.bf16 %v64, %v64
    %v77 = vld [vmem:[#allocation2] sm:$0xf]
    %v78 = vld [vmem:[#allocation2 + $0x4] sm:$0xf]
    %v79 = vld [vmem:[#allocation2 + $0x8] sm:$0xf]
    %v80 = vld [vmem:[#allocation2 + $0xc] sm:$0xf]
    %v81 = vld [vmem:[#allocation2 + $0x10] sm:$0xf]
    %v82 = vld [vmem:[#allocation2 + $0x14] sm:$0xf]
    %v83 = vld [vmem:[#allocation2 + $0x18] sm:$0xf]
    %v84 = vld [vmem:[#allocation2 + $0x1c] sm:$0xf]
    %v85 = vld [vmem:[#allocation2 + $0x20] sm:$0xf]
    %v86 = vld [vmem:[#allocation2 + $0x24] sm:$0xf]
    %v87 = vld [vmem:[#allocation2 + $0x28] sm:$0xf]
    %v88 = vld [vmem:[#allocation2 + $0x2c] sm:$0xf]
    %v89 = vld [vmem:[#allocation2 + $0x30] sm:$0xf]
    %v90 = vld [vmem:[#allocation2 + $0x34] sm:$0xf]
    %v91 = vld [vmem:[#allocation2 + $0x38] sm:$0xf]
    %v92 = vld [vmem:[#allocation2 + $0x3c] sm:$0xf]
    %v93 = vld [vmem:[#allocation2 + $0x40] sm:$0xf]
    %v94 = vld [vmem:[#allocation2 + $0x44] sm:$0xf]
    %v95 = vld [vmem:[#allocation2 + $0x48] sm:$0xf]
    %v96 = vld [vmem:[#allocation2 + $0x4c] sm:$0xf]
    %v97 = vld [vmem:[#allocation2 + $0x50] sm:$0xf]
    %v98 = vld [vmem:[#allocation2 + $0x54] sm:$0xf]
    %v99 = vld [vmem:[#allocation2 + $0x58] sm:$0xf]
    %v100 = vld [vmem:[#allocation2 + $0x5c] sm:$0xf]
    %v101 = vld [vmem:[#allocation2 + $0x60] sm:$0xf]
    %v102 = vld [vmem:[#allocation2 + $0x64] sm:$0xf]
    %v103 = vld [vmem:[#allocation2 + $0x68] sm:$0xf]
    %v104 = vld [vmem:[#allocation2 + $0x6c] sm:$0xf]
    %v105 = vld [vmem:[#allocation2 + $0x70] sm:$0xf]
    %v106 = vld [vmem:[#allocation2 + $0x74] sm:$0xf]
    %v107 = vld [vmem:[#allocation2 + $0x78] sm:$0xf]
    %v108 = vld [vmem:[#allocation2 + $0x7c] sm:$0xf]
    %v109 = vld [vmem:[#allocation2 + $0x80] sm:$0xf]
    %v110 = vld [vmem:[#allocation2 + $0x84] sm:$0xf]
    %v111 = vld [vmem:[#allocation2 + $0x88] sm:$0xf]
    %v112 = vld [vmem:[#allocation2 + $0x8c] sm:$0xf]
    %v113 = vld [vmem:[#allocation2 + $0x90] sm:$0xf]
    %v114 = vld [vmem:[#allocation2 + $0x94] sm:$0xf]
    %v115 = vld [vmem:[#allocation2 + $0x98] sm:$0xf]
    %v116 = vld [vmem:[#allocation2 + $0x9c] sm:$0xf]
    %v117 = vld [vmem:[#allocation2 + $0xa0] sm:$0xf]
    %v118 = vld [vmem:[#allocation2 + $0xa4] sm:$0xf]
    %v119 = vld [vmem:[#allocation2 + $0xa8] sm:$0xf]
    %v120 = vld [vmem:[#allocation2 + $0xac] sm:$0xf]
    %v121 = vld [vmem:[#allocation2 + $0xb0] sm:$0xf]
    %v122 = vld [vmem:[#allocation2 + $0xb4] sm:$0xf]
    %v123 = vld [vmem:[#allocation2 + $0xb8] sm:$0xf]
    %v124 = vld [vmem:[#allocation2 + $0xbc] sm:$0xf]
    %v125 = vld [vmem:[#allocation2 + $0xc0] sm:$0xf]
    %v126 = vld [vmem:[#allocation2 + $0xc4] sm:$0xf]
    %v127 = vld [vmem:[#allocation2 + $0xc8] sm:$0xf]
    %v128 = vld [vmem:[#allocation2 + $0xcc] sm:$0xf]
    %v129 = vld [vmem:[#allocation2 + $0xd0] sm:$0xf]
    %v130 = vld [vmem:[#allocation2 + $0xd4] sm:$0xf]
    %v131 = vld [vmem:[#allocation2 + $0xd8] sm:$0xf]
    %v132 = vld [vmem:[#allocation2 + $0xdc] sm:$0xf]
    %v133 = vld [vmem:[#allocation2 + $0xe0] sm:$0xf]
    %v134 = vld [vmem:[#allocation2 + $0xe4] sm:$0xf]
    %v135 = vld [vmem:[#allocation2 + $0xe8] sm:$0xf]
    %v136 = vld [vmem:[#allocation2 + $0xec] sm:$0xf]
    %v137 = vld [vmem:[#allocation2 + $0xf0] sm:$0xf]
    %v138 = vld [vmem:[#allocation2 + $0xf4] sm:$0xf]
    %v139 = vld [vmem:[#allocation2 + $0xf8] sm:$0xf]
    %v140 = vld [vmem:[#allocation2 + $0xfc] sm:$0xf]
    %v141 = vld [vmem:[#allocation2 + $0x100] sm:$0xf]
    %v142 = vld [vmem:[#allocation2 + $0x104] sm:$0xf]
    %v143 = vld [vmem:[#allocation2 + $0x108] sm:$0xf]
    %v144 = vld [vmem:[#allocation2 + $0x10c] sm:$0xf]
    %v145 = vld [vmem:[#allocation2 + $0x110] sm:$0xf]
    %v146 = vld [vmem:[#allocation2 + $0x114] sm:$0xf]
    %v147 = vld [vmem:[#allocation2 + $0x118] sm:$0xf]
    %v148 = vld [vmem:[#allocation2 + $0x11c] sm:$0xf]
    %v149 = vld [vmem:[#allocation2 + $0x120] sm:$0xf]
    %v150 = vld [vmem:[#allocation2 + $0x124] sm:$0xf]
    %v151 = vld [vmem:[#allocation2 + $0x128] sm:$0xf]
    %v152 = vld [vmem:[#allocation2 + $0x12c] sm:$0xf]
    %v153 = vld [vmem:[#allocation2 + $0x130] sm:$0xf]
    %v154 = vld [vmem:[#allocation2 + $0x134] sm:$0xf]
    %v155 = vld [vmem:[#allocation2 + $0x138] sm:$0xf]
    %v156 = vld [vmem:[#allocation2 + $0x13c] sm:$0xf]
    %v157 = vld [vmem:[#allocation2 + $0x140] sm:$0xf]
    %v158 = vld [vmem:[#allocation2 + $0x144] sm:$0xf]
    %v159 = vld [vmem:[#allocation2 + $0x148] sm:$0xf]
    %v160 = vld [vmem:[#allocation2 + $0x14c] sm:$0xf]
    %v161 = vld [vmem:[#allocation2 + $0x150] sm:$0xf]
    %v162 = vld [vmem:[#allocation2 + $0x154] sm:$0xf]
    %v163 = vld [vmem:[#allocation2 + $0x158] sm:$0xf]
    %v164 = vld [vmem:[#allocation2 + $0x15c] sm:$0xf]
    %v165 = vld [vmem:[#allocation2 + $0x160] sm:$0xf]
    %v166 = vld [vmem:[#allocation2 + $0x164] sm:$0xf]
    %v167 = vld [vmem:[#allocation2 + $0x168] sm:$0xf]
    %v168 = vld [vmem:[#allocation2 + $0x16c] sm:$0xf]
    %v169 = vld [vmem:[#allocation2 + $0x170] sm:$0xf]
    %v170 = vld [vmem:[#allocation2 + $0x174] sm:$0xf]
    %v171 = vld [vmem:[#allocation2 + $0x178] sm:$0xf]
    %v172 = vld [vmem:[#allocation2 + $0x17c] sm:$0xf]
    %v173 = vld [vmem:[%s2] sm:$0x1]
    %v175 = vlaneseq
    %v176 = vshrl.u32 %v175, 7
    %v177 = vsub.s32 0, %v176
    %v178 = vrot.slane %v173, %v177
    %v276 = vunpack.c.l.b16 %v77
    %v277 = vunpack.c.l.b16 %v78
    %v278 = vunpack.c.l.b16 %v79
    %v279 = vunpack.c.l.b16 %v80
    %v280 = vunpack.c.l.b16 %v81
    %v281 = vunpack.c.l.b16 %v82
    %v282 = vunpack.c.l.b16 %v83
    %v283 = vunpack.c.l.b16 %v84
    %v284 = vunpack.c.l.b16 %v85
    %v285 = vunpack.c.l.b16 %v86
    %v286 = vunpack.c.l.b16 %v87
    %v287 = vunpack.c.l.b16 %v88
    %v288 = vunpack.c.l.b16 %v89
    %v289 = vunpack.c.l.b16 %v90
    %v290 = vunpack.c.l.b16 %v91
    %v291 = vunpack.c.l.b16 %v92
    %v292 = vunpack.c.l.b16 %v93
    %v293 = vunpack.c.l.b16 %v94
    %v294 = vunpack.c.l.b16 %v95
    %v295 = vunpack.c.l.b16 %v96
    %v296 = vunpack.c.l.b16 %v97
    %v297 = vunpack.c.l.b16 %v98
    %v298 = vunpack.c.l.b16 %v99
    %v299 = vunpack.c.l.b16 %v100
    %v300 = vunpack.c.l.b16 %v101
    %v301 = vunpack.c.l.b16 %v102
    %v302 = vunpack.c.l.b16 %v103
    %v303 = vunpack.c.l.b16 %v104
    %v304 = vunpack.c.l.b16 %v105
    %v305 = vunpack.c.l.b16 %v106
    %v306 = vunpack.c.l.b16 %v107
    %v307 = vunpack.c.l.b16 %v108
    %v308 = vunpack.c.l.b16 %v109
    %v309 = vunpack.c.l.b16 %v110
    %v310 = vunpack.c.l.b16 %v111
    %v311 = vunpack.c.l.b16 %v112
    %v312 = vunpack.c.l.b16 %v113
    %v313 = vunpack.c.l.b16 %v114
    %v314 = vunpack.c.l.b16 %v115
    %v315 = vunpack.c.l.b16 %v116
    %v316 = vunpack.c.l.b16 %v117
    %v317 = vunpack.c.l.b16 %v118
    %v318 = vunpack.c.l.b16 %v119
    %v319 = vunpack.c.l.b16 %v120
    %v320 = vunpack.c.l.b16 %v121
    %v321 = vunpack.c.l.b16 %v122
    %v322 = vunpack.c.l.b16 %v123
    %v323 = vunpack.c.l.b16 %v124
    %v324 = vunpack.c.l.b16 %v125
    %v325 = vunpack.c.l.b16 %v126
    %v326 = vunpack.c.l.b16 %v127
    %v327 = vunpack.c.l.b16 %v128
    %v328 = vunpack.c.l.b16 %v129
    %v329 = vunpack.c.l.b16 %v130
    %v330 = vunpack.c.l.b16 %v131
    %v331 = vunpack.c.l.b16 %v132
    %v332 = vunpack.c.l.b16 %v133
    %v333 = vunpack.c.l.b16 %v134
    %v334 = vunpack.c.l.b16 %v135
    %v335 = vunpack.c.l.b16 %v136
    %v336 = vunpack.c.l.b16 %v137
    %v337 = vunpack.c.l.b16 %v138
    %v338 = vunpack.c.l.b16 %v139
    %v339 = vunpack.c.l.b16 %v140
    %v340 = vunpack.c.l.b16 %v141
    %v341 = vunpack.c.l.b16 %v142
    %v342 = vunpack.c.l.b16 %v143
    %v343 = vunpack.c.l.b16 %v144
    %v344 = vunpack.c.l.b16 %v145
    %v345 = vunpack.c.l.b16 %v146
    %v346 = vunpack.c.l.b16 %v147
    %v347 = vunpack.c.l.b16 %v148
    %v348 = vunpack.c.l.b16 %v149
    %v349 = vunpack.c.l.b16 %v150
    %v350 = vunpack.c.l.b16 %v151
    %v351 = vunpack.c.l.b16 %v152
    %v352 = vunpack.c.l.b16 %v153
    %v353 = vunpack.c.l.b16 %v154
    %v354 = vunpack.c.l.b16 %v155
    %v355 = vunpack.c.l.b16 %v156
    %v356 = vunpack.c.l.b16 %v157
    %v357 = vunpack.c.l.b16 %v158
    %v358 = vunpack.c.l.b16 %v159
    %v359 = vunpack.c.l.b16 %v160
    %v360 = vunpack.c.l.b16 %v161
    %v361 = vunpack.c.l.b16 %v162
    %v362 = vunpack.c.l.b16 %v163
    %v363 = vunpack.c.l.b16 %v164
    %v364 = vunpack.c.l.b16 %v165
    %v365 = vunpack.c.l.b16 %v166
    %v366 = vunpack.c.l.b16 %v167
    %v367 = vunpack.c.l.b16 %v168
    %v368 = vunpack.c.l.b16 %v169
    %v369 = vunpack.c.l.b16 %v170
    %v370 = vunpack.c.l.b16 %v171
    %v371 = vunpack.c.l.b16 %v172
    %v372 = vpack.c.b16 %v277, %v276
    %v373 = vpack.c.b16 %v279, %v278
    %v374 = vpack.c.b16 %v281, %v280
    %v375 = vpack.c.b16 %v283, %v282
    %v376 = vpack.c.b16 %v285, %v284
    %v377 = vpack.c.b16 %v287, %v286
    %v378 = vpack.c.b16 %v289, %v288
    %v379 = vpack.c.b16 %v291, %v290
    %v380 = vpack.c.b16 %v293, %v292
    %v381 = vpack.c.b16 %v295, %v294
    %v382 = vpack.c.b16 %v297, %v296
    %v383 = vpack.c.b16 %v299, %v298
    %v384 = vpack.c.b16 %v301, %v300
    %v385 = vpack.c.b16 %v303, %v302
    %v386 = vpack.c.b16 %v305, %v304
    %v387 = vpack.c.b16 %v307, %v306
    %v388 = vpack.c.b16 %v309, %v308
    %v389 = vpack.c.b16 %v311, %v310
    %v390 = vpack.c.b16 %v313, %v312
    %v391 = vpack.c.b16 %v315, %v314
    %v392 = vpack.c.b16 %v317, %v316
    %v393 = vpack.c.b16 %v319, %v318
    %v394 = vpack.c.b16 %v321, %v320
    %v395 = vpack.c.b16 %v323, %v322
    %v396 = vpack.c.b16 %v325, %v324
    %v397 = vpack.c.b16 %v327, %v326
    %v398 = vpack.c.b16 %v329, %v328
    %v399 = vpack.c.b16 %v331, %v330
    %v400 = vpack.c.b16 %v333, %v332
    %v401 = vpack.c.b16 %v335, %v334
    %v402 = vpack.c.b16 %v337, %v336
    %v403 = vpack.c.b16 %v339, %v338
    %v404 = vpack.c.b16 %v341, %v340
    %v405 = vpack.c.b16 %v343, %v342
    %v406 = vpack.c.b16 %v345, %v344
    %v407 = vpack.c.b16 %v347, %v346
    %v408 = vpack.c.b16 %v349, %v348
    %v409 = vpack.c.b16 %v351, %v350
    %v410 = vpack.c.b16 %v353, %v352
    %v411 = vpack.c.b16 %v355, %v354
    %v412 = vpack.c.b16 %v357, %v356
    %v413 = vpack.c.b16 %v359, %v358
    %v414 = vpack.c.b16 %v361, %v360
    %v415 = vpack.c.b16 %v363, %v362
    %v416 = vpack.c.b16 %v365, %v364
    %v417 = vpack.c.b16 %v367, %v366
    %v418 = vpack.c.b16 %v369, %v368
    %v419 = vpack.c.b16 %v371, %v370
    %468 = vmatprep.subr.bf16.mxu0 0
    %469 = vmatpush1.bf16.msra.mxu0 %v372
    %470 = vmatprep.subr.bf16.mxu0 0
    %471 = vmatpush1.bf16.msra.mxu0 %v373
    %472 = vmatprep.subr.bf16.mxu0 0
    %473 = vmatpush1.bf16.msra.mxu0 %v374
    %474 = vmatprep.subr.bf16.mxu0 0
    %475 = vmatpush1.bf16.msra.mxu0 %v375
    %476 = vmatprep.subr.bf16.mxu0 0
    %477 = vmatpush1.bf16.msra.mxu0 %v376
    %478 = vmatprep.subr.bf16.mxu0 0
    %479 = vmatpush1.bf16.msra.mxu0 %v377
    %480 = vmatprep.subr.bf16.mxu0 0
    %481 = vmatpush1.bf16.msra.mxu0 %v378
    %482 = vmatprep.subr.bf16.mxu0 0
    %483 = vmatpush1.bf16.msra.mxu0 %v379
    %484 = vmatprep.subr.bf16.mxu0 0
    %485 = vmatpush1.bf16.msra.mxu0 %v380
    %486 = vmatprep.subr.bf16.mxu0 0
    %487 = vmatpush1.bf16.msra.mxu0 %v381
    %488 = vmatprep.subr.bf16.mxu0 0
    %489 = vmatpush1.bf16.msra.mxu0 %v382
    %490 = vmatprep.subr.bf16.mxu0 0
    %491 = vmatpush1.bf16.msra.mxu0 %v383
    %492 = vmatprep.subr.bf16.mxu0 0
    %493 = vmatpush1.bf16.msra.mxu0 %v384
    %494 = vmatprep.subr.bf16.mxu0 0
    %495 = vmatpush1.bf16.msra.mxu0 %v385
    %496 = vmatprep.subr.bf16.mxu0 0
    %497 = vmatpush1.bf16.msra.mxu0 %v386
    %498 = vmatprep.subr.bf16.mxu0 0
    %499 = vmatpush1.bf16.msra.mxu0 %v387
    %500 = vmatprep.mubr.bf16.mxu0 %v72
    %501 = vmatmul.mubr.bf16.gmra.mrb[0].mxu0 %v71
    %v502 = vpop.f32.mrb[0].mxu0
    %v503 = vadd.f32 %v178, %v502
    %v504 = vpop.f32.mrb[0].mxu0
    %v505 = vpop.f32.mrb[0].mxu0
    %v506 = vpop.f32.mrb[0].mxu0
    %507 = vdwg.mxu0
    %508 = vmatprep.subr.bf16.mxu0 0
    %509 = vmatpush1.bf16.msra.mxu0 %v388
    %510 = vmatprep.subr.bf16.mxu0 0
    %511 = vmatpush1.bf16.msra.mxu0 %v389
    %512 = vmatprep.subr.bf16.mxu0 0
    %513 = vmatpush1.bf16.msra.mxu0 %v390
    %514 = vmatprep.subr.bf16.mxu0 0
    %515 = vmatpush1.bf16.msra.mxu0 %v391
    %516 = vmatprep.subr.bf16.mxu0 0
    %517 = vmatpush1.bf16.msra.mxu0 %v392
    %518 = vmatprep.subr.bf16.mxu0 0
    %519 = vmatpush1.bf16.msra.mxu0 %v393
    %520 = vmatprep.subr.bf16.mxu0 0
    %521 = vmatpush1.bf16.msra.mxu0 %v394
    %522 = vmatprep.subr.bf16.mxu0 0
    %523 = vmatpush1.bf16.msra.mxu0 %v395
    %524 = vmatprep.subr.bf16.mxu0 0
    %525 = vmatpush1.bf16.msra.mxu0 %v396
    %526 = vmatprep.subr.bf16.mxu0 0
    %527 = vmatpush1.bf16.msra.mxu0 %v397
    %528 = vmatprep.subr.bf16.mxu0 0
    %529 = vmatpush1.bf16.msra.mxu0 %v398
    %530 = vmatprep.subr.bf16.mxu0 0
    %531 = vmatpush1.bf16.msra.mxu0 %v399
    %532 = vmatprep.subr.bf16.mxu0 0
    %533 = vmatpush1.bf16.msra.mxu0 %v400
    %534 = vmatprep.subr.bf16.mxu0 0
    %535 = vmatpush1.bf16.msra.mxu0 %v401
    %536 = vmatprep.subr.bf16.mxu0 0
    %537 = vmatpush1.bf16.msra.mxu0 %v402
    %538 = vmatprep.subr.bf16.mxu0 0
    %539 = vmatpush1.bf16.msra.mxu0 %v403
    %540 = vmatprep.mubr.bf16.mxu0 %v74
    %541 = vmatmul.mubr.bf16.gmra.mrb[0].mxu0 %v73
    %v542 = vpop.f32.mrb[0].mxu0
    %v543 = vadd.f32 %v503, %v542
    %v544 = vpop.f32.mrb[0].mxu0
    %v545 = vpop.f32.mrb[0].mxu0
    %v546 = vpop.f32.mrb[0].mxu0
    %547 = vdwg.mxu0
    %548 = vmatprep.subr.bf16.mxu0 0
    %549 = vmatpush1.bf16.msra.mxu0 %v404
    %550 = vmatprep.subr.bf16.mxu0 0
    %551 = vmatpush1.bf16.msra.mxu0 %v405
    %552 = vmatprep.subr.bf16.mxu0 0
    %553 = vmatpush1.bf16.msra.mxu0 %v406
    %554 = vmatprep.subr.bf16.mxu0 0
    %555 = vmatpush1.bf16.msra.mxu0 %v407
    %556 = vmatprep.subr.bf16.mxu0 0
    %557 = vmatpush1.bf16.msra.mxu0 %v408
    %558 = vmatprep.subr.bf16.mxu0 0
    %559 = vmatpush1.bf16.msra.mxu0 %v409
    %560 = vmatprep.subr.bf16.mxu0 0
    %561 = vmatpush1.bf16.msra.mxu0 %v410
    %562 = vmatprep.subr.bf16.mxu0 0
    %563 = vmatpush1.bf16.msra.mxu0 %v411
    %564 = vmatprep.subr.bf16.mxu0 0
    %565 = vmatpush1.bf16.msra.mxu0 %v412
    %566 = vmatprep.subr.bf16.mxu0 0
    %567 = vmatpush1.bf16.msra.mxu0 %v413
    %568 = vmatprep.subr.bf16.mxu0 0
    %569 = vmatpush1.bf16.msra.mxu0 %v414
    %570 = vmatprep.subr.bf16.mxu0 0
    %571 = vmatpush1.bf16.msra.mxu0 %v415
    %572 = vmatprep.subr.bf16.mxu0 0
    %573 = vmatpush1.bf16.msra.mxu0 %v416
    %574 = vmatprep.subr.bf16.mxu0 0
    %575 = vmatpush1.bf16.msra.mxu0 %v417
    %576 = vmatprep.subr.bf16.mxu0 0
    %577 = vmatpush1.bf16.msra.mxu0 %v418
    %578 = vmatprep.subr.bf16.mxu0 0
    %579 = vmatpush1.bf16.msra.mxu0 %v419
    %580 = vmatprep.mubr.bf16.mxu0 %v76
    %581 = vmatmul.mubr.bf16.gmra.mrb[0].mxu0 %v75
    %v582 = vpop.f32.mrb[0].mxu0
    %v583 = vadd.f32 %v543, %v582
    %v584 = vpop.f32.mrb[0].mxu0
    %v585 = vpop.f32.mrb[0].mxu0
    %v586 = vpop.f32.mrb[0].mxu0
    %587 = vdwg.mxu0
    %v588 = vmax.f32 %v583, 0.0
    %v589 = vpack.c.bf16 %v588, %v588
    %v590 = vld [vmem:[%s3] sm:$0xf]
    %v591 = vld [vmem:[%s3 + $0x4] sm:$0xf]
    %v592 = vld [vmem:[%s3 + $0x8] sm:$0xf]
    %v593 = vld [vmem:[%s3 + $0xc] sm:$0xf]
    %v594 = vld [vmem:[%s3 + $0x10] sm:$0xf]
    %v595 = vld [vmem:[%s3 + $0x14] sm:$0xf]
    %v596 = vld [vmem:[%s3 + $0x18] sm:$0xf]
    %v597 = vld [vmem:[%s3 + $0x1c] sm:$0xf]
    %v598 = vld [vmem:[%s3 + $0x20] sm:$0xf]
    %v599 = vld [vmem:[%s3 + $0x24] sm:$0xf]
    %v600 = vld [vmem:[%s3 + $0x28] sm:$0xf]
    %v601 = vld [vmem:[%s3 + $0x2c] sm:$0xf]
    %v602 = vld [vmem:[%s3 + $0x30] sm:$0xf]
    %v603 = vld [vmem:[%s3 + $0x34] sm:$0xf]
    %v604 = vld [vmem:[%s3 + $0x38] sm:$0xf]
    %v605 = vld [vmem:[%s3 + $0x3c] sm:$0xf]
    %v606 = vld [vmem:[%s4] sm:$0x1]
    %v608 = vlaneseq
    %v609 = vshrl.u32 %v608, 7
    %v610 = vsub.s32 0, %v609
    %v611 = vrot.slane %v606, %v610
    %v629 = vunpack.c.l.b16 %v590
    %v630 = vunpack.c.l.b16 %v591
    %v631 = vunpack.c.l.b16 %v592
    %v632 = vunpack.c.l.b16 %v593
    %v633 = vunpack.c.l.b16 %v594
    %v634 = vunpack.c.l.b16 %v595
    %v635 = vunpack.c.l.b16 %v596
    %v636 = vunpack.c.l.b16 %v597
    %v637 = vunpack.c.l.b16 %v598
    %v638 = vunpack.c.l.b16 %v599
    %v639 = vunpack.c.l.b16 %v600
    %v640 = vunpack.c.l.b16 %v601
    %v641 = vunpack.c.l.b16 %v602
    %v642 = vunpack.c.l.b16 %v603
    %v643 = vunpack.c.l.b16 %v604
    %v644 = vunpack.c.l.b16 %v605
    %v645 = vpack.c.b16 %v630, %v629
    %v646 = vpack.c.b16 %v632, %v631
    %v647 = vpack.c.b16 %v634, %v633
    %v648 = vpack.c.b16 %v636, %v635
    %v649 = vpack.c.b16 %v638, %v637
    %v650 = vpack.c.b16 %v640, %v639
    %v651 = vpack.c.b16 %v642, %v641
    %v652 = vpack.c.b16 %v644, %v643
    %661 = vmatprep.subr.bf16.mxu0 0
    %662 = vmatpush1.bf16.msra.mxu0 %v645
    %663 = vmatprep.subr.bf16.mxu0 0
    %664 = vmatpush1.bf16.msra.mxu0 %v646
    %665 = vmatprep.subr.bf16.mxu0 0
    %666 = vmatpush1.bf16.msra.mxu0 %v647
    %667 = vmatprep.subr.bf16.mxu0 0
    %668 = vmatpush1.bf16.msra.mxu0 %v648
    %669 = vmatprep.subr.bf16.mxu0 0
    %670 = vmatpush1.bf16.msra.mxu0 %v649
    %671 = vmatprep.subr.bf16.mxu0 0
    %672 = vmatpush1.bf16.msra.mxu0 %v650
    %673 = vmatprep.subr.bf16.mxu0 0
    %674 = vmatpush1.bf16.msra.mxu0 %v651
    %675 = vmatprep.subr.bf16.mxu0 0
    %676 = vmatpush1.bf16.msra.mxu0 %v652
    %677 = vmatprep.subr.bf16.mxu0 0
    %678 = vmatpush1.bf16.msra.mxu0 0
    %679 = vmatprep.subr.bf16.mxu0 0
    %680 = vmatpush1.bf16.msra.mxu0 0
    %681 = vmatprep.subr.bf16.mxu0 0
    %682 = vmatpush1.bf16.msra.mxu0 0
    %683 = vmatprep.subr.bf16.mxu0 0
    %684 = vmatpush1.bf16.msra.mxu0 0
    %685 = vmatprep.subr.bf16.mxu0 0
    %686 = vmatpush1.bf16.msra.mxu0 0
    %687 = vmatprep.subr.bf16.mxu0 0
    %688 = vmatpush1.bf16.msra.mxu0 0
    %689 = vmatprep.subr.bf16.mxu0 0
    %690 = vmatpush1.bf16.msra.mxu0 0
    %691 = vmatprep.subr.bf16.mxu0 0
    %692 = vmatpush1.bf16.msra.mxu0 0
    %693 = vmatprep.mubr.bf16.mxu0 0
    %694 = vmatmul.mubr.bf16.gmra.mrb[0].mxu0 %v589
    %v695 = vpop.f32.mrb[0].mxu0
    %v696 = vadd.f32 %v611, %v695
    %v697 = vpop.f32.mrb[0].mxu0
    %v698 = vpop.f32.mrb[0].mxu0
    %v699 = vpop.f32.mrb[0].mxu0
    %700 = vdwg.mxu0
    %vm701 = vcmask 254976
    %702 = vst.msk [vmem:[#allocation5] sm:$0x3] %vm701, %v696
    // Predicated region
    $region26: #{tpu_custom_call.1} parent=1 // pred_check
      _
    $region27: #{tpu_custom_call.1} parent=1 // pred_check_branch
      %704 = sbr.rel (0) target = $region29
    $region28: #{tpu_custom_call.1} parent=1 // pred_region
      %s706 = ssub.s32 32, 32
      %707 = vsyncadd [#allocation4], %s706
      %s709 = sshll.u32 [#allocation5], 4
      %s710 = int_to_ptr.vmem [resolvable:$true] %s709
      %712 = dma.vmem_to_hbm [thread:$0]  %s710, 32, %s5, [#allocation4]
    $region29: #{tpu_custom_call.1} parent=1 // pred_fallthru
      _
    // Predicated region
    $region30: #{tpu_custom_call.1} parent=1 // pred_check
      _
    $region31: #{tpu_custom_call.1} parent=1 // pred_check_branch
      %714 = sbr.rel (0) target = $region33
    $region32: #{tpu_custom_call.1} parent=1 // pred_region
      %715 = dma.done [#allocation4], 32
    $region33: #{tpu_custom_call.1} parent=1 // pred_fallthru
      _
    %716 = vsyncpa [#allocation3], 1
    %717 = vsyncpa [#allocation4], 1

</llo_original>
